<compile_context>
chip_gen: v5e
topology: v5e:2x2
jax: 0.10.0
libtpu: 0.0.40
codegen_flags: <defaults>
</compile_context>

<pallas_src>
import jax
import jax.numpy as jnp
import numpy as np
from jax.experimental import pallas as pl
from jax.experimental.pallas import tpu as pltpu


# --------------------------------------------------------------------------
# kernel
# --------------------------------------------------------------------------
def _dwt_kernel(x_ref, m_ref, ll_ref, hl_ref, lh_ref, hh_ref):
    # x_ref: (T, 2W)  lanes [0:W] = even image row, lanes [W:2W] = odd image row
    # m_ref: (W, W)   column-direction Haar combine (includes the global 1/2)
    w = m_ref.shape[0]
    w2 = w // 2

    x = x_ref[...].astype(jnp.float32)      # (T, 2W)
    xe = x[:, :w]                           # even rows   (static lane slice)
    xo = x[:, w:]                           # odd rows
    ps = xe + xo                            # row pair-sum   (VPU)
    pd = xo - xe                            # row pair-diff  (VPU)

    m = m_ref[...]
    # Column de-interleave + butterfly as one MXU contraction per branch:
    #   ys = [ LL | HL ],  yd = [ LH | HH ]   (each (T, W))
    ys = jnp.dot(ps, m, preferred_element_type=jnp.float32)
    yd = jnp.dot(pd, m, preferred_element_type=jnp.float32)

    ll_ref[...] = ys[:, :w2].astype(ll_ref.dtype)
    hl_ref[...] = ys[:, w2:].astype(hl_ref.dtype)
    lh_ref[...] = yd[:, :w2].astype(lh_ref.dtype)
    hh_ref[...] = yd[:, w2:].astype(hh_ref.dtype)


# --------------------------------------------------------------------------
# wrapper
# --------------------------------------------------------------------------
def _haar_col_matrix(w):
    """(W, W): cols [0:W/2] = 0.5*(c[2j]+c[2j+1]), cols [W/2:W] = 0.5*(c[2j+1]-c[2j])."""
    w2 = w // 2
    m = np.zeros((w, w), dtype=np.float32)
    j = np.arange(w2)
    m[2 * j, j] = 0.5
    m[2 * j + 1, j] = 0.5
    m[2 * j, w2 + j] = -0.5
    m[2 * j + 1, w2 + j] = 0.5
    return jnp.asarray(m)


def _row_tile(n, w, budget_bytes=2 << 20):
    """Rows per grid step: (tn, 2W) f32 block <= budget, multiple of 8 sublanes."""
    cap = budget_bytes // (2 * w * 4)
    cap = int(max(8, min(cap, 4096)))
    if n <= cap:
        return n                         # one block covers the full extent
    t = (cap // 8) * 8
    d = t
    while d >= 8:                        # prefer an exact divisor (no ragged tile)
        if n % d == 0:
            return d
        d -= 8
    return t                             # ragged last block: Pallas masks writes


def dwt_forward(x):
    """x: (B, C, H, W) float -> (LL, HL, LH, HH), each (B, C, H/2, W/2)."""
    B, C, H, W = x.shape
    assert H % 2 == 0 and W % 2 == 0, "DWT requires even spatial dims"
    N = B * C * (H // 2)
    W2 = W // 2

    xr = x.reshape(N, 2 * W)             # free row-major view: [even row | odd row]
    m = _haar_col_matrix(W)

    tn = _row_tile(N, W)
    grid = (pl.cdiv(N, tn),)
    out_sd = jax.ShapeDtypeStruct((N, W2), x.dtype)

    ll, hl, lh, hh = pl.pallas_call(
        _dwt_kernel,
        grid=grid,
        in_specs=[
            pl.BlockSpec((tn, 2 * W), lambda i: (i, 0)),
            pl.BlockSpec((W, W), lambda i: (0, 0)),      # fetched once
        ],
        out_specs=[pl.BlockSpec((tn, W2), lambda i: (i, 0))] * 4,
        out_shape=[out_sd] * 4,
        compiler_params=pltpu.CompilerParams(
            dimension_semantics=("parallel",)),
    )(xr, m)

    shp = (B, C, H // 2, W // 2)
    return (ll.reshape(shp), hl.reshape(shp),            # free views
            lh.reshape(shp), hh.reshape(shp))


# --------------------------------------------------------------------------
# self-test
# --------------------------------------------------------------------------
if __name__ == "__main__":
    B, C, H, W = 2, 4, 16, 16
    key = jax.random.PRNGKey(0)
    x = jax.random.normal(key, (B, C, H, W), jnp.float32)

    ll, hl, lh, hh = jax.jit(dwt_forward)(x)
    jax.block_until_ready((ll, hl, lh, hh))

    # pure-JAX reference mirroring the PyTorch dwt_init
    x01 = x[:, :, 0::2, :] / 2
    x02 = x[:, :, 1::2, :] / 2
    x1 = x01[:, :, :, 0::2]
    x2 = x02[:, :, :, 0::2]
    x3 = x01[:, :, :, 1::2]
    x4 = x02[:, :, :, 1::2]
    r_ll = x1 + x2 + x3 + x4
    r_hl = -x1 - x2 + x3 + x4
    r_lh = -x1 + x2 - x3 + x4
    r_hh = x1 - x2 - x3 + x4

    for got, ref in ((ll, r_ll), (hl, r_hl), (lh, r_lh), (hh, r_hh)):
        assert got.shape == ref.shape
        err = float(jnp.max(jnp.abs(got - ref)))
        assert jnp.allclose(got, ref, atol=1e-3, rtol=1e-3), err
        assert bool(jnp.all(jnp.isfinite(got)))
    print("KERNEL_OK")
</pallas_src>

<mosaic_0001>
module attributes {stable_mosaic.version = 11 : i64} {
  func.func @_dwt_kernel(%arg0: i32, %arg1: memref<64x32xf32, #tpu.memory_space<vmem>>, %arg2: memref<16x16xf32, #tpu.memory_space<vmem>>, %arg3: memref<64x8xf32, #tpu.memory_space<vmem>>, %arg4: memref<64x8xf32, #tpu.memory_space<vmem>>, %arg5: memref<64x8xf32, #tpu.memory_space<vmem>>, %arg6: memref<64x8xf32, #tpu.memory_space<vmem>>) attributes {dimension_semantics = [#tpu.dimension_semantics<parallel>], iteration_bounds = array<i64: 1>, scalar_prefetch = 0 : i64, scratch_operands = 0 : i64, tpu.core_type = #tpu.core_type<tc>, window_params = [{transform_indices = @transform_0, window_bounds = array<i64: 64, 32>}, {pipeline_mode = #tpu.pipeline_mode<synchronous>, transform_indices = @transform_1, window_bounds = array<i64: 16, 16>}, {transform_indices = @transform_2, window_bounds = array<i64: 64, 8>}, {transform_indices = @transform_3, window_bounds = array<i64: 64, 8>}, {transform_indices = @transform_4, window_bounds = array<i64: 64, 8>}, {transform_indices = @transform_5, window_bounds = array<i64: 64, 8>}]} {
    %c0 = arith.constant 0 : index
    %c0_0 = arith.constant 0 : index
    %0 = vector.load %arg1[%c0, %c0_0] : memref<64x32xf32, #tpu.memory_space<vmem>>, vector<64x32xf32>
    %1 = vector.extract_strided_slice %0 {offsets = [0, 0], sizes = [64, 16], strides = [1, 1]} : vector<64x32xf32> to vector<64x16xf32>
    %2 = vector.extract_strided_slice %0 {offsets = [0, 16], sizes = [64, 16], strides = [1, 1]} : vector<64x32xf32> to vector<64x16xf32>
    %3 = arith.addf %1, %2 : vector<64x16xf32>
    %4 = arith.subf %2, %1 : vector<64x16xf32>
    %c0_1 = arith.constant 0 : index
    %c0_2 = arith.constant 0 : index
    %5 = vector.load %arg2[%c0_1, %c0_2] : memref<16x16xf32, #tpu.memory_space<vmem>>, vector<16x16xf32>
    %cst = arith.constant dense<0.000000e+00> : vector<64x16xf32>
    %6 = tpu.matmul %3, %5, %cst {dimension_numbers = #tpu.dot_dimension_numbers<[1], [0], [0], [1], [0, 0, 1, 1], [], []>} : vector<64x16xf32>, vector<16x16xf32>, vector<64x16xf32> -> vector<64x16xf32>
    %cst_3 = arith.constant dense<0.000000e+00> : vector<64x16xf32>
    %7 = tpu.matmul %4, %5, %cst_3 {dimension_numbers = #tpu.dot_dimension_numbers<[1], [0], [0], [1], [0, 0, 1, 1], [], []>} : vector<64x16xf32>, vector<16x16xf32>, vector<64x16xf32> -> vector<64x16xf32>
    %8 = vector.extract_strided_slice %6 {offsets = [0, 0], sizes = [64, 8], strides = [1, 1]} : vector<64x16xf32> to vector<64x8xf32>
    %c0_4 = arith.constant 0 : index
    %c0_5 = arith.constant 0 : index
    %9 = vector.load %arg3[%c0_4, %c0_5] : memref<64x8xf32, #tpu.memory_space<vmem>>, vector<64x8xf32>
    tpu.vector_store %arg3[%c0_4, %c0_5], %8 {strides = array<i32>} : memref<64x8xf32, #tpu.memory_space<vmem>>, vector<64x8xf32>,
    %10 = vector.extract_strided_slice %6 {offsets = [0, 8], sizes = [64, 8], strides = [1, 1]} : vector<64x16xf32> to vector<64x8xf32>
    %c0_6 = arith.constant 0 : index
    %c0_7 = arith.constant 0 : index
    %11 = vector.load %arg4[%c0_6, %c0_7] : memref<64x8xf32, #tpu.memory_space<vmem>>, vector<64x8xf32>
    tpu.vector_store %arg4[%c0_6, %c0_7], %10 {strides = array<i32>} : memref<64x8xf32, #tpu.memory_space<vmem>>, vector<64x8xf32>,
    %12 = vector.extract_strided_slice %7 {offsets = [0, 0], sizes = [64, 8], strides = [1, 1]} : vector<64x16xf32> to vector<64x8xf32>
    %c0_8 = arith.constant 0 : index
    %c0_9 = arith.constant 0 : index
    %13 = vector.load %arg5[%c0_8, %c0_9] : memref<64x8xf32, #tpu.memory_space<vmem>>, vector<64x8xf32>
    tpu.vector_store %arg5[%c0_8, %c0_9], %12 {strides = array<i32>} : memref<64x8xf32, #tpu.memory_space<vmem>>, vector<64x8xf32>,
    %14 = vector.extract_strided_slice %7 {offsets = [0, 8], sizes = [64, 8], strides = [1, 1]} : vector<64x16xf32> to vector<64x8xf32>
    %c0_10 = arith.constant 0 : index
    %c0_11 = arith.constant 0 : index
    %15 = vector.load %arg6[%c0_10, %c0_11] : memref<64x8xf32, #tpu.memory_space<vmem>>, vector<64x8xf32>
    tpu.vector_store %arg6[%c0_10, %c0_11], %14 {strides = array<i32>} : memref<64x8xf32, #tpu.memory_space<vmem>>, vector<64x8xf32>,
    return
  }
  func.func @transform_0(%arg0: i32) -> (i32, i32) {
    %c0_i32 = arith.constant 0 : i32
    %c0_i32_0 = arith.constant 0 : i32
    return %arg0, %c0_i32 : i32, i32
  }
  func.func @transform_1(%arg0: i32) -> (i32, i32) {
    %c0_i32 = arith.constant 0 : i32
    %c0_i32_0 = arith.constant 0 : i32
    %c0_i32_1 = arith.constant 0 : i32
    return %c0_i32, %c0_i32_0 : i32, i32
  }
  func.func @transform_2(%arg0: i32) -> (i32, i32) {
    %c0_i32 = arith.constant 0 : i32
    %c0_i32_0 = arith.constant 0 : i32
    return %arg0, %c0_i32 : i32, i32
  }
  func.func @transform_3(%arg0: i32) -> (i32, i32) {
    %c0_i32 = arith.constant 0 : i32
    %c0_i32_0 = arith.constant 0 : i32
    return %arg0, %c0_i32 : i32, i32
  }
  func.func @transform_4(%arg0: i32) -> (i32, i32) {
    %c0_i32 = arith.constant 0 : i32
    %c0_i32_0 = arith.constant 0 : i32
    return %arg0, %c0_i32 : i32, i32
  }
  func.func @transform_5(%arg0: i32) -> (i32, i32) {
    %c0_i32 = arith.constant 0 : i32
    %c0_i32_0 = arith.constant 0 : i32
    return %arg0, %c0_i32 : i32, i32
  }
}

</mosaic_0001>

<llo_original>
// kernel: dwt_forward.1
$region0: #{dwt_forward.1}
  #allocation0 [shape = 'u32[]', space=smem, size = 0x4, offset = 0x4, fixed_abs, tag = 'smem constant byte address 0x4 - core index']
  #allocation1 [shape = 'u32[72,128]{1,0:T(1,128)}', space=vmem, size = 0x9000, scoped, tag = 'internal scratch']
  %s0 = inlined_call_operand.vmem [shape: f32[64,32], index: 0, kind: input, shape index: {}]
  %s1 = inlined_call_operand.vmem [shape: f32[16,16], index: 1, kind: input, shape index: {}]
  %s2 = inlined_call_operand.hbm [shape: f32[64,8], index: 2, kind: output, shape index: {0}]
  %s3 = inlined_call_operand.hbm [shape: f32[64,8], index: 3, kind: output, shape index: {1}]
  %s4 = inlined_call_operand.hbm [shape: f32[64,8], index: 4, kind: output, shape index: {2}]
  %s5 = inlined_call_operand.hbm [shape: f32[64,8], index: 5, kind: output, shape index: {3}]
  %6 = xla_tuple %s2, %s3, %s4, %s5
  %s7 = sld [smem:[#allocation0]]
  $region42: #{dwt_forward.1} parent=0
    _
  %s9 = ssub.s32 1, %s7
  %s10 = scalar_select 0, %s9, %s7
  $region1: #{dwt_forward.1} parent=0
    #allocation2 [shape = 'u8[32768]{0}', space=vmem, size = 0x8000, scoped, tag = 'output window, operand 0, single buffered']
    #allocation3 [shape = 's32[1]{0}', space=sflag, size = 0x4, scoped, tag = 'scoped memory for dwt_forward.1']
    #allocation4 [shape = 'u8[32768]{0}', space=vmem, size = 0x8000, scoped, tag = 'output window, operand 1, single buffered']
    #allocation5 [shape = 's32[1]{0}', space=sflag, size = 0x4, scoped, tag = 'scoped memory for dwt_forward.1']
    #allocation6 [shape = 'u8[32768]{0}', space=vmem, size = 0x8000, scoped, tag = 'output window, operand 2, single buffered']
    #allocation7 [shape = 'u8[32768]{0}', space=vmem, size = 0x8000, scoped, tag = 'output window, operand 3, single buffered']
    #allocation8 [shape = 's32[1]{0}', space=sflag, size = 0x4, scoped, tag = 'scoped memory for dwt_forward.1']
    %11 = vsyncpa [#allocation3], 0
    %12 = vsyncpa [#allocation5], 0
    %13 = vsyncpa [#allocation8], 0
    // Predicated region
    $region2: #{dwt_forward.1} parent=1 // pred_check
      _
    $region3: #{dwt_forward.1} parent=1 // pred_check_branch
      %15 = sbr.rel (0) target = $region5
    $region4: #{dwt_forward.1} parent=1 // pred_region
      _
    $region5: #{dwt_forward.1} parent=1 // pred_fallthru
      _
    // Predicated region
    $region6: #{dwt_forward.1} parent=1 // pred_check
      _
    $region7: #{dwt_forward.1} parent=1 // pred_check_branch
      %17 = sbr.rel (0) target = $region9
    $region8: #{dwt_forward.1} parent=1 // pred_region
      _
    $region9: #{dwt_forward.1} parent=1 // pred_fallthru
      _
    %v18 = vld [vmem:[%s0] sm:$0xff]
    %v19 = vld [vmem:[%s0 + $0x8] sm:$0xff]
    %v20 = vld [vmem:[%s0 + $0x10] sm:$0xff]
    %v21 = vld [vmem:[%s0 + $0x18] sm:$0xff]
    %v22 = vld [vmem:[%s0 + $0x20] sm:$0xff]
    %v23 = vld [vmem:[%s0 + $0x28] sm:$0xff]
    %v24 = vld [vmem:[%s0 + $0x30] sm:$0xff]
    %v25 = vld [vmem:[%s0 + $0x38] sm:$0xff]
    %34 = vrot.lane.b32.xlu0 %v18, 112
    %v35 = vpop.permute.xlu0 %34
    %36 = vrot.lane.b32.xlu0 %v19, 112
    %v37 = vpop.permute.xlu0 %36
    %38 = vrot.lane.b32.xlu0 %v20, 112
    %v39 = vpop.permute.xlu0 %38
    %40 = vrot.lane.b32.xlu0 %v21, 112
    %v41 = vpop.permute.xlu0 %40
    %42 = vrot.lane.b32.xlu0 %v22, 112
    %v43 = vpop.permute.xlu0 %42
    %44 = vrot.lane.b32.xlu0 %v23, 112
    %v45 = vpop.permute.xlu0 %44
    %46 = vrot.lane.b32.xlu0 %v24, 112
    %v47 = vpop.permute.xlu0 %46
    %48 = vrot.lane.b32.xlu0 %v25, 112
    %v49 = vpop.permute.xlu0 %48
    %v58 = vadd.f32 %v18, %v35
    %v59 = vadd.f32 %v19, %v37
    %v60 = vadd.f32 %v20, %v39
    %v61 = vadd.f32 %v21, %v41
    %v62 = vadd.f32 %v22, %v43
    %v63 = vadd.f32 %v23, %v45
    %v64 = vadd.f32 %v24, %v47
    %v65 = vadd.f32 %v25, %v49
    %66 = vrot.lane.b32.xlu0 %v18, 16
    %v67 = vpop.permute.xlu0 %66
    %68 = vrot.lane.b32.xlu0 %v19, 16
    %v69 = vpop.permute.xlu0 %68
    %70 = vrot.lane.b32.xlu0 %v20, 16
    %v71 = vpop.permute.xlu0 %70
    %72 = vrot.lane.b32.xlu0 %v21, 16
    %v73 = vpop.permute.xlu0 %72
    %74 = vrot.lane.b32.xlu0 %v22, 16
    %v75 = vpop.permute.xlu0 %74
    %76 = vrot.lane.b32.xlu0 %v23, 16
    %v77 = vpop.permute.xlu0 %76
    %78 = vrot.lane.b32.xlu0 %v24, 16
    %v79 = vpop.permute.xlu0 %78
    %80 = vrot.lane.b32.xlu0 %v25, 16
    %v81 = vpop.permute.xlu0 %80
    %v90 = vsub.f32 %v18, %v67
    %v91 = vsub.f32 %v19, %v69
    %v92 = vsub.f32 %v20, %v71
    %v93 = vsub.f32 %v21, %v73
    %v94 = vsub.f32 %v22, %v75
    %v95 = vsub.f32 %v23, %v77
    %v96 = vsub.f32 %v24, %v79
    %v97 = vsub.f32 %v25, %v81
    %v98 = vld [vmem:[%s1] sm:$0xff]
    %v99 = vld [vmem:[%s1 + $0x8] sm:$0xff]
    %vm100 = vcmask 130048
    %v102 = vsel %vm100, %v58, 0
    %v105 = vsel %vm100, %v59, 0
    %v108 = vsel %vm100, %v60, 0
    %v111 = vsel %vm100, %v61, 0
    %v114 = vsel %vm100, %v62, 0
    %v117 = vsel %vm100, %v63, 0
    %v120 = vsel %vm100, %v64, 0
    %v123 = vsel %vm100, %v65, 0
    %125 = vmatpush.msra.mxu0 0.0
    %126 = vmatpush.msra.mxu0 0.0
    %127 = vmatpush.msra.mxu0 0.0
    %128 = vmatpush.msra.mxu0 0.0
    %129 = vmatpush.msra.mxu0 0.0
    %130 = vmatpush.msra.mxu0 0.0
    %131 = vmatpush.msra.mxu0 0.0
    %132 = vmatpush.msra.mxu0 0.0
    %133 = vmatpush.msra.mxu0 0.0
    %134 = vmatpush.msra.mxu0 0.0
    %135 = vmatpush.msra.mxu0 0.0
    %136 = vmatpush.msra.mxu0 0.0
    %137 = vmatpush.msra.mxu0 0.0
    %138 = vmatpush.msra.mxu0 0.0
    %139 = vmatpush.msra.mxu0 %v99
    %140 = vmatpush.msra.mxu0 %v98
    %141 = vmatmul.f32.gmra.mxu0 %v102
    %v142 = vpop.f32.mrf.mxu0
    %v143 = vadd.f32 0.0, %v142
    %144 = vmatmul.f32.gmra.mxu0 %v105
    %v145 = vpop.f32.mrf.mxu0
    %v146 = vadd.f32 0.0, %v145
    %147 = vmatmul.f32.gmra.mxu0 %v108
    %v148 = vpop.f32.mrf.mxu0
    %v149 = vadd.f32 0.0, %v148
    %150 = vmatmul.f32.gmra.mxu0 %v111
    %v151 = vpop.f32.mrf.mxu0
    %v152 = vadd.f32 0.0, %v151
    %153 = vmatmul.f32.gmra.mxu0 %v114
    %v154 = vpop.f32.mrf.mxu0
    %v155 = vadd.f32 0.0, %v154
    %156 = vmatmul.f32.gmra.mxu0 %v117
    %v157 = vpop.f32.mrf.mxu0
    %v158 = vadd.f32 0.0, %v157
    %159 = vmatmul.f32.gmra.mxu0 %v120
    %v160 = vpop.f32.mrf.mxu0
    %v161 = vadd.f32 0.0, %v160
    %162 = vmatmul.f32.gmra.mxu0 %v123
    %v163 = vpop.f32.mrf.mxu0
    %v164 = vadd.f32 0.0, %v163
    %165 = vdwg.mxu0
    %174 = vrot.lane.b32.xlu0 %v90, 112
    %v175 = vpop.permute.xlu0 %174
    %176 = vrot.lane.b32.xlu0 %v91, 112
    %v177 = vpop.permute.xlu0 %176
    %178 = vrot.lane.b32.xlu0 %v92, 112
    %v179 = vpop.permute.xlu0 %178
    %180 = vrot.lane.b32.xlu0 %v93, 112
    %v181 = vpop.permute.xlu0 %180
    %182 = vrot.lane.b32.xlu0 %v94, 112
    %v183 = vpop.permute.xlu0 %182
    %184 = vrot.lane.b32.xlu0 %v95, 112
    %v185 = vpop.permute.xlu0 %184
    %186 = vrot.lane.b32.xlu0 %v96, 112
    %v187 = vpop.permute.xlu0 %186
    %188 = vrot.lane.b32.xlu0 %v97, 112
    %v189 = vpop.permute.xlu0 %188
    %v190 = vsel %vm100, %v175, 0
    %v192 = vsel %vm100, %v177, 0
    %v194 = vsel %vm100, %v179, 0
    %v196 = vsel %vm100, %v181, 0
    %v198 = vsel %vm100, %v183, 0
    %v200 = vsel %vm100, %v185, 0
    %v202 = vsel %vm100, %v187, 0
    %v204 = vsel %vm100, %v189, 0
    %206 = vmatpush.msra.mxu0 0.0
    %207 = vmatpush.msra.mxu0 0.0
    %208 = vmatpush.msra.mxu0 0.0
    %209 = vmatpush.msra.mxu0 0.0
    %210 = vmatpush.msra.mxu0 0.0
    %211 = vmatpush.msra.mxu0 0.0
    %212 = vmatpush.msra.mxu0 0.0
    %213 = vmatpush.msra.mxu0 0.0
    %214 = vmatpush.msra.mxu0 0.0
    %215 = vmatpush.msra.mxu0 0.0
    %216 = vmatpush.msra.mxu0 0.0
    %217 = vmatpush.msra.mxu0 0.0
    %218 = vmatpush.msra.mxu0 0.0
    %219 = vmatpush.msra.mxu0 0.0
    %220 = vmatpush.msra.mxu0 %v99
    %221 = vmatpush.msra.mxu0 %v98
    %222 = vmatmul.f32.gmra.mxu0 %v190
    %v223 = vpop.f32.mrf.mxu0
    %v224 = vadd.f32 0.0, %v223
    %225 = vmatmul.f32.gmra.mxu0 %v192
    %v226 = vpop.f32.mrf.mxu0
    %v227 = vadd.f32 0.0, %v226
    %228 = vmatmul.f32.gmra.mxu0 %v194
    %v229 = vpop.f32.mrf.mxu0
    %v230 = vadd.f32 0.0, %v229
    %231 = vmatmul.f32.gmra.mxu0 %v196
    %v232 = vpop.f32.mrf.mxu0
    %v233 = vadd.f32 0.0, %v232
    %234 = vmatmul.f32.gmra.mxu0 %v198
    %v235 = vpop.f32.mrf.mxu0
    %v236 = vadd.f32 0.0, %v235
    %237 = vmatmul.f32.gmra.mxu0 %v200
    %v238 = vpop.f32.mrf.mxu0
    %v239 = vadd.f32 0.0, %v238
    %240 = vmatmul.f32.gmra.mxu0 %v202
    %v241 = vpop.f32.mrf.mxu0
    %v242 = vadd.f32 0.0, %v241
    %243 = vmatmul.f32.gmra.mxu0 %v204
    %v244 = vpop.f32.mrf.mxu0
    %v245 = vadd.f32 0.0, %v244
    %246 = vdwg.mxu0
    %vm247 = vcmask 64512
    %248 = vst.msk [vmem:[#allocation2] sm:$0xff] %vm247, %v143
    %249 = vst.msk [vmem:[#allocation2 + $0x8] sm:$0xff] %vm247, %v146
    %250 = vst.msk [vmem:[#allocation2 + $0x10] sm:$0xff] %vm247, %v149
    %251 = vst.msk [vmem:[#allocation2 + $0x18] sm:$0xff] %vm247, %v152
    %252 = vst.msk [vmem:[#allocation2 + $0x20] sm:$0xff] %vm247, %v155
    %253 = vst.msk [vmem:[#allocation2 + $0x28] sm:$0xff] %vm247, %v158
    %254 = vst.msk [vmem:[#allocation2 + $0x30] sm:$0xff] %vm247, %v161
    %255 = vst.msk [vmem:[#allocation2 + $0x38] sm:$0xff] %vm247, %v164
    %264 = vrot.lane.b32.xlu0 %v143, 120
    %v265 = vpop.permute.xlu0 %264
    %266 = vrot.lane.b32.xlu0 %v146, 120
    %v267 = vpop.permute.xlu0 %266
    %268 = vrot.lane.b32.xlu0 %v149, 120
    %v269 = vpop.permute.xlu0 %268
    %270 = vrot.lane.b32.xlu0 %v152, 120
    %v271 = vpop.permute.xlu0 %270
    %272 = vrot.lane.b32.xlu0 %v155, 120
    %v273 = vpop.permute.xlu0 %272
    %274 = vrot.lane.b32.xlu0 %v158, 120
    %v275 = vpop.permute.xlu0 %274
    %276 = vrot.lane.b32.xlu0 %v161, 120
    %v277 = vpop.permute.xlu0 %276
    %278 = vrot.lane.b32.xlu0 %v164, 120
    %v279 = vpop.permute.xlu0 %278
    %288 = vst.msk [vmem:[#allocation4] sm:$0xff] %vm247, %v265
    %289 = vst.msk [vmem:[#allocation4 + $0x8] sm:$0xff] %vm247, %v267
    %290 = vst.msk [vmem:[#allocation4 + $0x10] sm:$0xff] %vm247, %v269
    %291 = vst.msk [vmem:[#allocation4 + $0x18] sm:$0xff] %vm247, %v271
    %292 = vst.msk [vmem:[#allocation4 + $0x20] sm:$0xff] %vm247, %v273
    %293 = vst.msk [vmem:[#allocation4 + $0x28] sm:$0xff] %vm247, %v275
    %294 = vst.msk [vmem:[#allocation4 + $0x30] sm:$0xff] %vm247, %v277
    %295 = vst.msk [vmem:[#allocation4 + $0x38] sm:$0xff] %vm247, %v279
    %296 = vst.msk [vmem:[#allocation6] sm:$0xff] %vm247, %v224
    %297 = vst.msk [vmem:[#allocation6 + $0x8] sm:$0xff] %vm247, %v227
    %298 = vst.msk [vmem:[#allocation6 + $0x10] sm:$0xff] %vm247, %v230
    %299 = vst.msk [vmem:[#allocation6 + $0x18] sm:$0xff] %vm247, %v233
    %300 = vst.msk [vmem:[#allocation6 + $0x20] sm:$0xff] %vm247, %v236
    %301 = vst.msk [vmem:[#allocation6 + $0x28] sm:$0xff] %vm247, %v239
    %302 = vst.msk [vmem:[#allocation6 + $0x30] sm:$0xff] %vm247, %v242
    %303 = vst.msk [vmem:[#allocation6 + $0x38] sm:$0xff] %vm247, %v245
    %312 = vrot.lane.b32.xlu0 %v224, 120
    %v313 = vpop.permute.xlu0 %312
    %314 = vrot.lane.b32.xlu0 %v227, 120
    %v315 = vpop.permute.xlu0 %314
    %316 = vrot.lane.b32.xlu0 %v230, 120
    %v317 = vpop.permute.xlu0 %316
    %318 = vrot.lane.b32.xlu0 %v233, 120
    %v319 = vpop.permute.xlu0 %318
    %320 = vrot.lane.b32.xlu0 %v236, 120
    %v321 = vpop.permute.xlu0 %320
    %322 = vrot.lane.b32.xlu0 %v239, 120
    %v323 = vpop.permute.xlu0 %322
    %324 = vrot.lane.b32.xlu0 %v242, 120
    %v325 = vpop.permute.xlu0 %324
    %326 = vrot.lane.b32.xlu0 %v245, 120
    %v327 = vpop.permute.xlu0 %326
    %336 = vst.msk [vmem:[#allocation7] sm:$0xff] %vm247, %v313
    %337 = vst.msk [vmem:[#allocation7 + $0x8] sm:$0xff] %vm247, %v315
    %338 = vst.msk [vmem:[#allocation7 + $0x10] sm:$0xff] %vm247, %v317
    %339 = vst.msk [vmem:[#allocation7 + $0x18] sm:$0xff] %vm247, %v319
    %340 = vst.msk [vmem:[#allocation7 + $0x20] sm:$0xff] %vm247, %v321
    %341 = vst.msk [vmem:[#allocation7 + $0x28] sm:$0xff] %vm247, %v323
    %342 = vst.msk [vmem:[#allocation7 + $0x30] sm:$0xff] %vm247, %v325
    %343 = vst.msk [vmem:[#allocation7 + $0x38] sm:$0xff] %vm247, %v327
    // Predicated region
    $region10: #{dwt_forward.1} parent=1 // pred_check
      _
    $region11: #{dwt_forward.1} parent=1 // pred_check_branch
      %345 = sbr.rel (0) target = $region13
    $region12: #{dwt_forward.1} parent=1 // pred_region
      %347 = vsyncadd [#allocation3], 0
      %s348 = sshll.u32 [#allocation2], 4
      %s349 = int_to_ptr.vmem [resolvable:$true] %s348
      %s350 = sshll.u32 %s2, 4
      %s351 = int_to_ptr.hbm [resolvable:$true] %s350
      %356 = dma.vmem_to_hbm [thread:$0]  %s349, 1024, %s351, [#allocation3], 128, 128, 8
    $region13: #{dwt_forward.1} parent=1 // pred_fallthru
      _
    // Predicated region
    $region14: #{dwt_forward.1} parent=1 // pred_check
      _
    $region15: #{dwt_forward.1} parent=1 // pred_check_branch
      %358 = sbr.rel (0) target = $region17
    $region16: #{dwt_forward.1} parent=1 // pred_region
      %360 = vsyncadd [#allocation5], 0
      %s361 = sshll.u32 [#allocation4], 4
      %s362 = int_to_ptr.vmem [resolvable:$true] %s361
      %s363 = sshll.u32 %s3, 4
      %s364 = int_to_ptr.hbm [resolvable:$true] %s363
      %369 = dma.vmem_to_hbm [thread:$0]  %s362, 1024, %s364, [#allocation5], 128, 128, 8
    $region17: #{dwt_forward.1} parent=1 // pred_fallthru
      _
    // Predicated region
    $region18: #{dwt_forward.1} parent=1 // pred_check
      _
    $region19: #{dwt_forward.1} parent=1 // pred_check_branch
      %371 = sbr.rel (0) target = $region21
    $region20: #{dwt_forward.1} parent=1 // pred_region
      %373 = vsyncadd [#allocation5], 0
      %s374 = sshll.u32 [#allocation6], 4
      %s375 = int_to_ptr.vmem [resolvable:$true] %s374
      %s376 = sshll.u32 %s4, 4
      %s377 = int_to_ptr.hbm [resolvable:$true] %s376
      %382 = dma.vmem_to_hbm [thread:$0]  %s375, 1024, %s377, [#allocation5], 128, 128, 8
    $region21: #{dwt_forward.1} parent=1 // pred_fallthru
      _
    // Predicated region
    $region22: #{dwt_forward.1} parent=1 // pred_check
      _
    $region23: #{dwt_forward.1} parent=1 // pred_check_branch
      %384 = sbr.rel (0) target = $region25
    $region24: #{dwt_forward.1} parent=1 // pred_region
      %386 = vsyncadd [#allocation8], 0
      %s387 = sshll.u32 [#allocation7], 4
      %s388 = int_to_ptr.vmem [resolvable:$true] %s387
      %s389 = sshll.u32 %s5, 4
      %s390 = int_to_ptr.hbm [resolvable:$true] %s389
      %395 = dma.vmem_to_hbm [thread:$0]  %s388, 1024, %s390, [#allocation8], 128, 128, 8
    $region25: #{dwt_forward.1} parent=1 // pred_fallthru
      _
    // Predicated region
    $region26: #{dwt_forward.1} parent=1 // pred_check
      _
    $region27: #{dwt_forward.1} parent=1 // pred_check_branch
      %397 = sbr.rel (0) target = $region29
    $region28: #{dwt_forward.1} parent=1 // pred_region
      %399 = dma.done [#allocation3], 1024
    $region29: #{dwt_forward.1} parent=1 // pred_fallthru
      _
    // Predicated region
    $region30: #{dwt_forward.1} parent=1 // pred_check
      _
    $region31: #{dwt_forward.1} parent=1 // pred_check_branch
      %401 = sbr.rel (0) target = $region33
    $region32: #{dwt_forward.1} parent=1 // pred_region
      %403 = dma.done [#allocation5], 1024
    $region33: #{dwt_forward.1} parent=1 // pred_fallthru
      _
    // Predicated region
    $region34: #{dwt_forward.1} parent=1 // pred_check
      _
    $region35: #{dwt_forward.1} parent=1 // pred_check_branch
      %405 = sbr.rel (0) target = $region37
    $region36: #{dwt_forward.1} parent=1 // pred_region
      %407 = dma.done [#allocation5], 1024
    $region37: #{dwt_forward.1} parent=1 // pred_fallthru
      _
    // Predicated region
    $region38: #{dwt_forward.1} parent=1 // pred_check
      _
    $region39: #{dwt_forward.1} parent=1 // pred_check_branch
      %409 = sbr.rel (0) target = $region41
    $region40: #{dwt_forward.1} parent=1 // pred_region
      %411 = dma.done [#allocation8], 1024
    $region41: #{dwt_forward.1} parent=1 // pred_fallthru
      _
    %412 = vsyncpa [#allocation3], 1
    %413 = vsyncpa [#allocation5], 1
    %414 = vsyncpa [#allocation8], 1

</llo_original>
